<compile_context>
chip_gen: v6e
topology: v6e:2x2x1
jax: 0.10.0
libtpu: 0.0.40
codegen_flags: <defaults>
</compile_context>

<pallas_src>
import functools

import jax
import jax.numpy as jnp
from jax.experimental import pallas as pl
from jax.experimental.pallas import tpu as pltpu


def _concat_dma_kernel(offsets, sizes, owners, *refs):
    """Direct HBM->HBM channel concat.

    refs = (*in_hbm_refs, out_hbm_ref, dma_sems). Grid step `s` copies every
    input it owns (owners[i] == s) into its slab of the output. All owned
    DMAs are started before any wait so the copies overlap on the DMA engines.
    """
    *in_refs, out_ref, sem = refs
    step = pl.program_id(0)
    out_is_2d = len(out_ref.shape) == 2

    def dma(i):
        off, sz = offsets[i], sizes[i]
        if out_is_2d:
            dst = out_ref.at[:, off:off + sz]      # lane-axis slab (128-aligned)
        else:
            dst = out_ref.at[:, off:off + sz, :]   # channel-axis slab
        return pltpu.make_async_copy(in_refs[i], dst, sem.at[i])

    # Start every DMA owned by this grid step ...
    for i in range(len(in_refs)):
        @pl.when(step == owners[i])
        def _start(i=i):
            dma(i).start()

    # ... then wait on them all.
    for i in range(len(in_refs)):
        @pl.when(step == owners[i])
        def _wait(i=i):
            dma(i).wait()


def feature_concat(layers, outputs, x=None):
    """JAX/Pallas equivalent of FeatureConcat(layers).forward(x, outputs)."""
    del x  # unused, exactly as in the PyTorch module
    selected = [outputs[i] for i in layers]
    if len(selected) == 1:
        return selected[0]          # multiple == False -> passthrough

    n, _, h, w = selected[0].shape
    dtype = selected[0].dtype
    for t in selected:
        assert t.ndim == 4 and t.shape[0] == n and t.shape[2:] == (h, w), (
            "FeatureConcat: routed layers must share batch and spatial dims")
        assert t.dtype == dtype, "FeatureConcat: routed layers must share dtype"

    hw = h * w
    chans = [int(t.shape[1]) for t in selected]
    c_total = sum(chans)
    num_in = len(selected)

    if hw % 128 == 0:
        # Lane-dense 2D views (N, C*H*W): every slab offset is a multiple of
        # 128 lanes -> whole aligned lane rows per DMA descriptor.
        sizes = [c * hw for c in chans]
        ins = [t.reshape(n, s) for t, s in zip(selected, sizes)]
        out_shape = (n, c_total * hw)
    else:
        # Odd spatial maps (13x13, 19x19, ...): keep a (N, C, H*W) view so the
        # concat offset lives on the channel axis and never turns the odd H*W
        # into an unaligned lane offset; the DMA engine does the strided copy.
        sizes = list(chans)
        ins = [t.reshape(n, c, hw) for t, c in zip(selected, chans)]
        out_shape = (n, c_total, hw)

    offsets, acc = [], 0
    for s in sizes:
        offsets.append(acc)
        acc += s

    # Two 'parallel' grid steps: feeds both TensorCores on v7x; on v5e/v6e the
    # extra step is negligible overhead. Inputs are greedily balanced across
    # the steps by element count.
    num_steps = 2
    load = [c * hw for c in chans]
    owners = [0] * num_in
    step_load = [0] * num_steps
    for i in sorted(range(num_in), key=lambda j: -load[j]):
        s = step_load.index(min(step_load))
        owners[i] = s
        step_load[s] += load[i]
    # TODO(synk): for N==1 routes dominated by one huge input, additionally
    # split that input along the batch/row axis so both v7x cores stay busy.

    kernel = functools.partial(
        _concat_dma_kernel, tuple(offsets), tuple(sizes), tuple(owners))

    out_flat = pl.pallas_call(
        kernel,
        out_shape=jax.ShapeDtypeStruct(out_shape, dtype),
        grid_spec=pltpu.PrefetchScalarGridSpec(
            num_scalar_prefetch=0,
            grid=(num_steps,),
            # Raw HBM refs: no auto HBM<->VMEM pipeline; the kernel DMAs
            # straight from the input HBM arrays into the output HBM slabs.
            in_specs=[pl.BlockSpec(memory_space=pl.ANY)] * num_in,
            out_specs=pl.BlockSpec(memory_space=pl.ANY),
            scratch_shapes=[pltpu.SemaphoreType.DMA((num_in,))],
        ),
        compiler_params=pltpu.CompilerParams(
            dimension_semantics=("parallel",),
        ),
    )(*ins)

    return out_flat.reshape(n, c_total, h, w)


if __name__ == "__main__":
    key = jax.random.PRNGKey(0)
    k0, k1, k2, kx = jax.random.split(key, 4)

    n, h, w = 2, 16, 16
    # Simulated list of earlier-layer outputs (NCHW feature maps).
    outputs = [
        jax.random.normal(k0, (n, 4, h, w), dtype=jnp.float32),   # layer 0
        jax.random.normal(k1, (n, 6, h, w), dtype=jnp.float32),   # layer 1
        jax.random.normal(k2, (n, 8, h, w), dtype=jnp.float32),   # layer 2
    ]
    x = jax.random.normal(kx, (n, 4, h, w), dtype=jnp.float32)  # unused, as in torch

    # --- multi-layer route: concat along channels ---------------------------
    layers = (0, 2)
    out = jax.block_until_ready(feature_concat(layers, outputs, x))
    ref = jnp.concatenate([outputs[i] for i in layers], axis=1)
    assert out.shape == (n, 4 + 8, h, w), out.shape
    assert out.dtype == jnp.float32
    assert jnp.array_equal(out, ref), "concat mismatch"

    # --- three-way route, exercises non-zero middle offset ------------------
    layers3 = (0, 1, 2)
    out3 = jax.block_until_ready(feature_concat(layers3, outputs, x))
    ref3 = jnp.concatenate([outputs[i] for i in layers3], axis=1)
    assert jnp.array_equal(out3, ref3), "3-way concat mismatch"

    # --- bf16 route: the DMA path has no sublane/dtype alignment issues -----
    outputs_bf16 = [o.astype(jnp.bfloat16) for o in outputs]
    out_bf = jax.block_until_ready(feature_concat((1, 2), outputs_bf16))
    ref_bf = jnp.concatenate([outputs_bf16[1], outputs_bf16[2]], axis=1)
    assert out_bf.dtype == jnp.bfloat16
    assert jnp.array_equal(out_bf, ref_bf), "bf16 concat mismatch"

    # --- single-layer route: passthrough ------------------------------------
    single = jax.block_until_ready(feature_concat((1,), outputs, x))
    assert jnp.array_equal(single, outputs[1]), "passthrough mismatch"

    print("KERNEL_OK")
</pallas_src>

<mosaic_0001>
module attributes {stable_mosaic.version = 11 : i64} {
  func.func @_concat_dma_kernel(%arg0: i32, %arg1: memref<2x1024xf32, #tpu.memory_space<any>>, %arg2: memref<2x2048xf32, #tpu.memory_space<any>>, %arg3: memref<2x3072xf32, #tpu.memory_space<any>>, %arg4: memref<2x!tpu.dma_semaphore, #tpu.memory_space<semaphore_mem>>) attributes {dimension_semantics = [#tpu.dimension_semantics<parallel>], iteration_bounds = array<i64: 2>, scalar_prefetch = 0 : i64, scratch_operands = 1 : i64, tpu.core_type = #tpu.core_type<tc>, window_params = [{}, {}, {}]} {
    %c1_i32 = arith.constant 1 : i32
    %0 = arith.cmpi eq, %arg0, %c1_i32 : i32
    %1 = arith.extui %0 : i1 to i32
    %c0_i32 = arith.constant 0 : i32
    %2 = arith.cmpi ne, %1, %c0_i32 : i32
    scf.if %2 {
      %c0_i32_6 = arith.constant 0 : i32
      %c0_i32_7 = arith.constant 0 : i32
      %c0_i32_8 = arith.constant 0 : i32
      %12 = tpu.memref_slice %arg3[%c0_i32_7, %c0_i32_8] : memref<2x3072xf32, #tpu.memory_space<any>> -> memref<2x1024xf32, #tpu.memory_space<any>>
      %13 = tpu.memref_slice %arg4[%c0_i32_6] : memref<2x!tpu.dma_semaphore, #tpu.memory_space<semaphore_mem>> -> memref<1x!tpu.dma_semaphore, #tpu.memory_space<semaphore_mem>>
      %14 = tpu.memref_squeeze %13 : memref<1x!tpu.dma_semaphore, #tpu.memory_space<semaphore_mem>> -> memref<!tpu.dma_semaphore, #tpu.memory_space<semaphore_mem>>
      tpu.enqueue_dma source(%arg1 : memref<2x1024xf32, #tpu.memory_space<any>>) target(%12 : memref<2x1024xf32, #tpu.memory_space<any>>) target_semaphore(%14 : memref<!tpu.dma_semaphore, #tpu.memory_space<semaphore_mem>>)
    } else {
    }
    %c0_i32_0 = arith.constant 0 : i32
    %3 = arith.cmpi eq, %arg0, %c0_i32_0 : i32
    %4 = arith.extui %3 : i1 to i32
    %c0_i32_1 = arith.constant 0 : i32
    %5 = arith.cmpi ne, %4, %c0_i32_1 : i32
    scf.if %5 {
      %c1_i32_6 = arith.constant 1 : i32
      %c0_i32_7 = arith.constant 0 : i32
      %c1024_i32 = arith.constant 1024 : i32
      %12 = tpu.memref_slice %arg3[%c0_i32_7, %c1024_i32] : memref<2x3072xf32, #tpu.memory_space<any>> -> memref<2x2048xf32, #tpu.memory_space<any>>
      %13 = tpu.memref_slice %arg4[%c1_i32_6] : memref<2x!tpu.dma_semaphore, #tpu.memory_space<semaphore_mem>> -> memref<1x!tpu.dma_semaphore, #tpu.memory_space<semaphore_mem>>
      %14 = tpu.memref_squeeze %13 : memref<1x!tpu.dma_semaphore, #tpu.memory_space<semaphore_mem>> -> memref<!tpu.dma_semaphore, #tpu.memory_space<semaphore_mem>>
      tpu.enqueue_dma source(%arg2 : memref<2x2048xf32, #tpu.memory_space<any>>) target(%12 : memref<2x2048xf32, #tpu.memory_space<any>>) target_semaphore(%14 : memref<!tpu.dma_semaphore, #tpu.memory_space<semaphore_mem>>)
    } else {
    }
    %c1_i32_2 = arith.constant 1 : i32
    %6 = arith.cmpi eq, %arg0, %c1_i32_2 : i32
    %7 = arith.extui %6 : i1 to i32
    %c0_i32_3 = arith.constant 0 : i32
    %8 = arith.cmpi ne, %7, %c0_i32_3 : i32
    scf.if %8 {
      %c0_i32_6 = arith.constant 0 : i32
      %c0_i32_7 = arith.constant 0 : i32
      %c0_i32_8 = arith.constant 0 : i32
      %12 = tpu.memref_slice %arg3[%c0_i32_7, %c0_i32_8] : memref<2x3072xf32, #tpu.memory_space<any>> -> memref<2x1024xf32, #tpu.memory_space<any>>
      %13 = tpu.memref_slice %arg4[%c0_i32_6] : memref<2x!tpu.dma_semaphore, #tpu.memory_space<semaphore_mem>> -> memref<1x!tpu.dma_semaphore, #tpu.memory_space<semaphore_mem>>
      %14 = tpu.memref_squeeze %13 : memref<1x!tpu.dma_semaphore, #tpu.memory_space<semaphore_mem>> -> memref<!tpu.dma_semaphore, #tpu.memory_space<semaphore_mem>>
      tpu.wait_dma2 semaphore(%14 : memref<!tpu.dma_semaphore, #tpu.memory_space<semaphore_mem>>) src(%arg1 : memref<2x1024xf32, #tpu.memory_space<any>>) dst(%12 : memref<2x1024xf32, #tpu.memory_space<any>>)
    } else {
    }
    %c0_i32_4 = arith.constant 0 : i32
    %9 = arith.cmpi eq, %arg0, %c0_i32_4 : i32
    %10 = arith.extui %9 : i1 to i32
    %c0_i32_5 = arith.constant 0 : i32
    %11 = arith.cmpi ne, %10, %c0_i32_5 : i32
    scf.if %11 {
      %c1_i32_6 = arith.constant 1 : i32
      %c0_i32_7 = arith.constant 0 : i32
      %c1024_i32 = arith.constant 1024 : i32
      %12 = tpu.memref_slice %arg3[%c0_i32_7, %c1024_i32] : memref<2x3072xf32, #tpu.memory_space<any>> -> memref<2x2048xf32, #tpu.memory_space<any>>
      %13 = tpu.memref_slice %arg4[%c1_i32_6] : memref<2x!tpu.dma_semaphore, #tpu.memory_space<semaphore_mem>> -> memref<1x!tpu.dma_semaphore, #tpu.memory_space<semaphore_mem>>
      %14 = tpu.memref_squeeze %13 : memref<1x!tpu.dma_semaphore, #tpu.memory_space<semaphore_mem>> -> memref<!tpu.dma_semaphore, #tpu.memory_space<semaphore_mem>>
      tpu.wait_dma2 semaphore(%14 : memref<!tpu.dma_semaphore, #tpu.memory_space<semaphore_mem>>) src(%arg2 : memref<2x2048xf32, #tpu.memory_space<any>>) dst(%12 : memref<2x2048xf32, #tpu.memory_space<any>>)
    } else {
    }
    return
  }
}

</mosaic_0001>

<llo_original>
// kernel: tpu_custom_call.1
$region0: #{tpu_custom_call.1}
  #allocation0 [shape = 'u32[]', space=smem, size = 0x4, offset = 0x4, fixed_abs, tag = 'smem constant byte address 0x4 - core index']
  #allocation1 [shape = 'u32[144,128]{1,0:T(1,128)}', space=vmem, size = 0x12000, scoped, tag = 'internal scratch']
  #allocation2 [shape = 's32[2]{0}', space=sflag, size = 0x8, scoped, tag = 'scratch operand']
  #allocation3 [shape = 's32[]', space=sflag, size = 0x4, offset = 0, fixed_abs, tag = 'sflag constant byte address 0x0 - dummy sync flag']
  #allocation4 [shape = 'u32[0]{0}', space=smem, size = 0, offset = 0, fixed_abs, tag = 'smem constant byte address 0x0 - null']
  #allocation5 [shape = 's32[]', space=sflag, size = 0x4, offset = 0, fixed_abs, tag = 'sflag constant byte address 0x0 - dummy sync flag']
  #allocation6 [shape = 'u32[0]{0}', space=smem, size = 0, offset = 0, fixed_abs, tag = 'smem constant byte address 0x0 - null']
  %s0 = inlined_call_operand.hbm [shape: f32[2,1024], index: 0, kind: input, shape index: {}]
  %s1 = inlined_call_operand.hbm [shape: f32[2,2048], index: 1, kind: input, shape index: {}]
  %s2 = inlined_call_operand.hbm [shape: f32[2,3072], index: 2, kind: output, shape index: {}]
  %s3 = sld [smem:[#allocation0]]
  $region25: #{tpu_custom_call.1} parent=0
    _
  %s5 = ssub.s32 1, %s3
  %s6 = scalar_select 0, %s5, %s3
  loop: start=0, step=1, limit=2
  $region2: #{tpu_custom_call.1} parent=0 // loop_pre_header
    _
  $region3: #{tpu_custom_call.1} parent=0 // loop_header
    %s8 = sphi 0, %s12
    %p9 = scmp.ge.s32.totalorder %s8, 2
  $region4: #{tpu_custom_call.1} parent=0 // loop_header_branch
    %11 = sbr.rel (%p9) target = $region8
  $region5: #{tpu_custom_call.1} parent=0 // loop_body
    %s13 = sadd.s32 %s8, 1
    %p14 = scmp.eq.s32.totalorder %s8, 1
    // Predicated region
    $region9: #{tpu_custom_call.1} parent=5 // pred_check
      %p15 = pneg %p14
    $region10: #{tpu_custom_call.1} parent=5 // pred_check_branch
      %17 = sbr.rel (%p15) target = $region12
    $region11: #{tpu_custom_call.1} parent=5 // pred_region
      %s19 = sshll.u32 1, 14
      %s20 = sxor.u32 4294967295, %s19
      %24 = dma.general %s0, 256, %s2, [#allocation2], 131072, [#allocation4], 0, 0
    $region12: #{tpu_custom_call.1} parent=5 // pred_fallthru
      _
    %p25 = scmp.eq.s32.totalorder %s8, 0
    // Predicated region
    $region13: #{tpu_custom_call.1} parent=5 // pred_check
      %p26 = pneg %p25
    $region14: #{tpu_custom_call.1} parent=5 // pred_check_branch
      %28 = sbr.rel (%p26) target = $region16
    $region15: #{tpu_custom_call.1} parent=5 // pred_region
      %s29 = scalar_lea.hbm %s2, 256
      %s30 = scalar_lea.sflag [#allocation2], 1
      %s32 = sshll.u32 1, 14
      %s33 = sxor.u32 4294967295, %s32
      %37 = dma.general %s1, 512, %s29, %s30, 131072, [#allocation6], 0, 0
    $region16: #{tpu_custom_call.1} parent=5 // pred_fallthru
      _
    // Predicated region
    $region17: #{tpu_custom_call.1} parent=5 // pred_check
      %p38 = pneg %p14
    $region18: #{tpu_custom_call.1} parent=5 // pred_check_branch
      %40 = sbr.rel (%p38) target = $region20
    $region19: #{tpu_custom_call.1} parent=5 // pred_region
      %s41 = smul.u32 2, 1
      %s42 = smul.u32 %s41, 8
      %s43 = sshll.u32 %s42, 4
      %44 = dma.done [#allocation2], %s43
    $region20: #{tpu_custom_call.1} parent=5 // pred_fallthru
      _
    // Predicated region
    $region21: #{tpu_custom_call.1} parent=5 // pred_check
      %p45 = pneg %p25
    $region22: #{tpu_custom_call.1} parent=5 // pred_check_branch
      %47 = sbr.rel (%p45) target = $region24
    $region23: #{tpu_custom_call.1} parent=5 // pred_region
      %s48 = scalar_lea.sflag [#allocation2], 1
      %s49 = smul.u32 2, 1
      %s50 = smul.u32 %s49, 16
      %s51 = sshll.u32 %s50, 4
      %52 = dma.done %s48, %s51
    $region24: #{tpu_custom_call.1} parent=5 // pred_fallthru
      _
  $region6: #{tpu_custom_call.1} parent=0 // loop_footer
    %s12 = sadd.s32 1, %s8
  $region7: #{tpu_custom_call.1} parent=0 // loop_footer_branch
    %7 = sbr.rel target = $region3
  $region8: #{tpu_custom_call.1} parent=0 // loop_exit
    _
  %53 = vsyncmov [#allocation2]
  %s54 = vpop.sfrf %53
  %p55 = scmp.eq.s32.totalorder %s54, 0
  %p56 = pneg %p55
  %58 = shalt.err (%p56)
  %s59 = scalar_lea.sflag [#allocation2], 1
  %60 = vsyncmov %s59
  %s61 = vpop.sfrf %60
  %p62 = scmp.eq.s32.totalorder %s61, 0
  %p63 = pneg %p62
  %65 = shalt.err (%p63)

</llo_original>
